<compile_context>
chip_gen: v7x
topology: tpu7x:2x2x1
jax: 0.10.0
libtpu: 0.0.40
codegen_flags: <defaults>
</compile_context>

<pallas_src>
import math
import jax
import jax.numpy as jnp
from jax.experimental import pallas as pl
from jax.experimental.pallas import tpu as pltpu


# ----------------------------- Pallas kernel ------------------------------ #
def time_embedding_kernel(t_ref, emb_ref, w1_ref, b1_ref, w2_ref, b2_ref, o_ref):
    B = t_ref.shape[0]          # [B, 1] int32
    T = emb_ref.shape[0]        # [T, d_model] f32

    # --- fused embedding gather as a one-hot matmul (vectorized, MXU) ---
    col = jax.lax.broadcasted_iota(jnp.int32, (B, T), 1)          # [B, T]
    onehot = (col == t_ref[...]).astype(jnp.float32)              # [B, T]
    x = jnp.dot(onehot, emb_ref[...],
                preferred_element_type=jnp.float32)               # [B, d_model] f32

    # --- Linear 1: bf16 weights, f32 accumulate, f32 bias ---
    h = jnp.dot(x.astype(jnp.bfloat16), w1_ref[...],
                preferred_element_type=jnp.float32) + b1_ref[...]  # [B, tdim] f32

    # --- Swish in f32 (EUP sigmoid + VPU mul) ---
    h = h * jax.nn.sigmoid(h)

    # --- Linear 2: bf16 weights, f32 accumulate, f32 bias ---
    o = jnp.dot(h.astype(jnp.bfloat16), w2_ref[...],
                preferred_element_type=jnp.float32) + b2_ref[...]  # [B, tdim] f32

    o_ref[...] = o.astype(o_ref.dtype)


def time_embedding_pallas(t, emb_table, w1, b1, w2, b2):
    """t: [B] int32 timesteps -> [B, tdim] f32. Single-block fused kernel."""
    B = t.shape[0]
    T, d_model = emb_table.shape
    tdim = w1.shape[1]

    vmem = pl.BlockSpec(memory_space=pltpu.MemorySpace.VMEM)

    cost = pl.CostEstimate(
        flops=2 * B * (T * d_model + d_model * tdim + tdim * tdim),
        transcendentals=B * tdim,                     # sigmoid
        bytes_accessed=(B * 4                         # t (int32)
                        + T * d_model * 4             # emb table (f32)
                        + d_model * tdim * 2          # w1 (bf16)
                        + tdim * 4                    # b1 (f32)
                        + tdim * tdim * 2             # w2 (bf16)
                        + tdim * 4                    # b2 (f32)
                        + B * tdim * 4),              # out (f32)
    )

    return pl.pallas_call(
        time_embedding_kernel,
        out_shape=jax.ShapeDtypeStruct((B, tdim), jnp.float32),
        in_specs=[vmem] * 6,
        out_specs=vmem,
        cost_estimate=cost,
    )(
        t.reshape(B, 1).astype(jnp.int32),
        emb_table,
        w1,
        b1.reshape(1, tdim),
        w2,
        b2.reshape(1, tdim),
    )


# ------------------------- parameter construction ------------------------- #
def make_sinusoidal_table(T, d_model):
    """Matches the PyTorch __init__: interleaved [sin, cos] per frequency."""
    emb = jnp.arange(0, d_model, 2, dtype=jnp.float32) / d_model * math.log(10000.0)
    emb = jnp.exp(-emb)                                      # [d_model // 2]
    pos = jnp.arange(T, dtype=jnp.float32)                   # [T]
    emb = pos[:, None] * emb[None, :]                        # [T, d_model // 2]
    emb = jnp.stack([jnp.sin(emb), jnp.cos(emb)], axis=-1)   # [T, d_model // 2, 2]
    return emb.reshape(T, d_model)                           # [T, d_model]


def xavier_uniform(key, fan_in, fan_out):
    bound = math.sqrt(6.0 / (fan_in + fan_out))
    # weight in [in, out] layout (already transposed vs. torch Linear)
    return jax.random.uniform(key, (fan_in, fan_out), jnp.float32, -bound, bound)


def init_time_embedding_params(key, T, d_model, tdim):
    k1, k2 = jax.random.split(key)
    return {
        # nn.Embedding.from_pretrained(..., freeze=False): trainable f32 table
        "emb_table": make_sinusoidal_table(T, d_model),
        # bf16 weight storage halves the dominant per-call weight DMA.
        "w1": xavier_uniform(k1, d_model, tdim).astype(jnp.bfloat16),
        "b1": jnp.zeros((tdim,), jnp.float32),
        "w2": xavier_uniform(k2, tdim, tdim).astype(jnp.bfloat16),
        "b2": jnp.zeros((tdim,), jnp.float32),
    }


@jax.jit
def time_embedding_forward(params, t):
    """t: [B] int32 timesteps -> [B, tdim] f32. Gather + MLP fully fused."""
    return time_embedding_pallas(
        t, params["emb_table"], params["w1"], params["b1"],
        params["w2"], params["b2"],
    )


# --------------------------------- main ------------------------------------ #
if __name__ == "__main__":
    # Small but TPU-friendly shapes consistent with the module:
    # T=32 timesteps, d_model=128, tdim=4*d_model=512, batch of 8 timesteps.
    T, d_model, tdim, B = 32, 128, 512, 8

    key = jax.random.PRNGKey(0)
    pkey, tkey = jax.random.split(key)
    params = init_time_embedding_params(pkey, T, d_model, tdim)

    t = jax.random.randint(tkey, (B,), 0, T, dtype=jnp.int32)

    out = time_embedding_forward(params, t)
    out = jax.block_until_ready(out)

    # Pure-JAX reference mimicking the kernel's mixed precision
    # (bf16 weights / activation inputs, f32 accumulate).
    x = params["emb_table"][t]                                          # [B, d_model] f32
    h = (x.astype(jnp.bfloat16).astype(jnp.float32)
         @ params["w1"].astype(jnp.float32)) + params["b1"]
    h = h * jax.nn.sigmoid(h)
    ref = (h.astype(jnp.bfloat16).astype(jnp.float32)
           @ params["w2"].astype(jnp.float32)) + params["b2"]

    assert out.shape == (B, tdim)
    assert jnp.allclose(out, ref, atol=1e-2, rtol=1e-2), (
        float(jnp.max(jnp.abs(out - ref))))

    print("KERNEL_OK")
</pallas_src>

<mosaic_0001>
module attributes {stable_mosaic.version = 11 : i64} {
  func.func @time_embedding_kernel(%arg0: memref<8x1xi32, #tpu.memory_space<vmem>>, %arg1: memref<32x128xf32, #tpu.memory_space<vmem>>, %arg2: memref<128x512xbf16, #tpu.memory_space<vmem>>, %arg3: memref<1x512xf32, #tpu.memory_space<vmem>>, %arg4: memref<512x512xbf16, #tpu.memory_space<vmem>>, %arg5: memref<1x512xf32, #tpu.memory_space<vmem>>, %arg6: memref<8x512xf32, #tpu.memory_space<vmem>>) attributes {dimension_semantics = [], scalar_prefetch = 0 : i64, scratch_operands = 0 : i64, tpu.core_type = #tpu.core_type<tc>} {
    %0 = tpu.iota {dimensions = array<i32: 1>} : vector<8x32xi32>
    %c0 = arith.constant 0 : index
    %c0_0 = arith.constant 0 : index
    %1 = vector.load %arg0[%c0, %c0_0] : memref<8x1xi32, #tpu.memory_space<vmem>>, vector<8x1xi32>
    %2 = vector.broadcast %1 : vector<8x1xi32> to vector<8x32xi32>
    %3 = arith.cmpi eq, %0, %2 : vector<8x32xi32>
    %4 = arith.extui %3 : vector<8x32xi1> to vector<8x32xi32>
    %5 = arith.sitofp %4 : vector<8x32xi32> to vector<8x32xf32>
    %c0_1 = arith.constant 0 : index
    %c0_2 = arith.constant 0 : index
    %6 = vector.load %arg1[%c0_1, %c0_2] : memref<32x128xf32, #tpu.memory_space<vmem>>, vector<32x128xf32>
    %cst = arith.constant dense<0.000000e+00> : vector<8x128xf32>
    %7 = tpu.matmul %5, %6, %cst {dimension_numbers = #tpu.dot_dimension_numbers<[1], [0], [0], [1], [0, 0, 1, 1], [], []>} : vector<8x32xf32>, vector<32x128xf32>, vector<8x128xf32> -> vector<8x128xf32>
    %8 = arith.truncf %7 : vector<8x128xf32> to vector<8x128xbf16>
    %c0_3 = arith.constant 0 : index
    %c0_4 = arith.constant 0 : index
    %9 = vector.load %arg2[%c0_3, %c0_4] : memref<128x512xbf16, #tpu.memory_space<vmem>>, vector<128x512xbf16>
    %cst_5 = arith.constant dense<0.000000e+00> : vector<8x512xf32>
    %10 = tpu.matmul %8, %9, %cst_5 {dimension_numbers = #tpu.dot_dimension_numbers<[1], [0], [0], [1], [0, 0, 1, 1], [], []>} : vector<8x128xbf16>, vector<128x512xbf16>, vector<8x512xf32> -> vector<8x512xf32>
    %c0_6 = arith.constant 0 : index
    %c0_7 = arith.constant 0 : index
    %11 = vector.load %arg3[%c0_6, %c0_7] : memref<1x512xf32, #tpu.memory_space<vmem>>, vector<1x512xf32>
    %12 = vector.broadcast %11 : vector<1x512xf32> to vector<8x512xf32>
    %13 = arith.addf %10, %12 : vector<8x512xf32>
    %14 = arith.negf %13 : vector<8x512xf32>
    %15 = math.exp %14 : vector<8x512xf32>
    %cst_8 = arith.constant 1.000000e+00 : f32
    %16 = vector.broadcast %cst_8 : f32 to vector<8x512xf32>
    %17 = arith.addf %16, %15 : vector<8x512xf32>
    %18 = arith.divf %16, %17 : vector<8x512xf32>
    %19 = arith.mulf %13, %18 : vector<8x512xf32>
    %20 = arith.truncf %19 : vector<8x512xf32> to vector<8x512xbf16>
    %c0_9 = arith.constant 0 : index
    %c0_10 = arith.constant 0 : index
    %21 = vector.load %arg4[%c0_9, %c0_10] : memref<512x512xbf16, #tpu.memory_space<vmem>>, vector<512x512xbf16>
    %cst_11 = arith.constant dense<0.000000e+00> : vector<8x512xf32>
    %22 = tpu.matmul %20, %21, %cst_11 {dimension_numbers = #tpu.dot_dimension_numbers<[1], [0], [0], [1], [0, 0, 1, 1], [], []>} : vector<8x512xbf16>, vector<512x512xbf16>, vector<8x512xf32> -> vector<8x512xf32>
    %c0_12 = arith.constant 0 : index
    %c0_13 = arith.constant 0 : index
    %23 = vector.load %arg5[%c0_12, %c0_13] : memref<1x512xf32, #tpu.memory_space<vmem>>, vector<1x512xf32>
    %24 = vector.broadcast %23 : vector<1x512xf32> to vector<8x512xf32>
    %25 = arith.addf %22, %24 : vector<8x512xf32>
    %c0_14 = arith.constant 0 : index
    %c0_15 = arith.constant 0 : index
    %26 = vector.load %arg6[%c0_14, %c0_15] : memref<8x512xf32, #tpu.memory_space<vmem>>, vector<8x512xf32>
    tpu.vector_store %arg6[%c0_14, %c0_15], %25 {strides = array<i32>} : memref<8x512xf32, #tpu.memory_space<vmem>>, vector<8x512xf32>,
    return
  }
}

</mosaic_0001>

<llo_original>
// kernel: time_embedding_forward.1
$region0: #{time_embedding_forward.1}
  #allocation0 [shape = 'u32[]', space=smem, size = 0x4, offset = 0x4, fixed_abs, tag = 'smem constant byte address 0x4 - core index']
  #allocation1 [shape = 'u32[144,128]{1,0:T(1,128)}', space=vmem, size = 0x12000, scoped, tag = 'internal scratch']
  %s0 = inlined_call_operand.vmem [shape: s32[8,1], index: 0, kind: input, shape index: {}]
  %s1 = inlined_call_operand.hbm [shape: f32[32,128], index: 1, kind: input, shape index: {}]
  %s2 = inlined_call_operand.hbm [shape: bf16[128,512], index: 2, kind: input, shape index: {}]
  %s3 = inlined_call_operand.vmem [shape: f32[1,512], index: 3, kind: input, shape index: {}]
  %s4 = inlined_call_operand.hbm [shape: bf16[512,512], index: 4, kind: input, shape index: {}]
  %s5 = inlined_call_operand.vmem [shape: f32[1,512], index: 5, kind: input, shape index: {}]
  %s6 = inlined_call_operand.hbm [shape: f32[8,512], index: 6, kind: output, shape index: {}]
  %s7 = sld [smem:[#allocation0]]
  $region46: #{time_embedding_forward.1} parent=0
    _
  %s9 = ssub.s32 1, %s7
  %s10 = scalar_select 0, %s9, %s7
  $region1: #{time_embedding_forward.1} parent=0
    #allocation2 [shape = 'u8[16384]{0}', space=vmem, size = 0x4000, scoped, tag = 'input window, operand 1, single buffered']
    #allocation3 [shape = 's32[1]{0}', space=sflag, size = 0x4, scoped, tag = 'scoped memory for time_embedding_forward.1']
    #allocation4 [shape = 's32[1]{0}', space=sflag, size = 0x4, scoped, tag = 'scoped memory for time_embedding_forward.1']
    #allocation5 [shape = 'u8[131072]{0}', space=vmem, size = 0x20000, scoped, tag = 'input window, operand 2, single buffered']
    #allocation6 [shape = 's32[1]{0}', space=sflag, size = 0x4, scoped, tag = 'scoped memory for time_embedding_forward.1']
    #allocation7 [shape = 'u8[524288]{0}', space=vmem, size = 0x80000, scoped, tag = 'input window, operand 4, single buffered']
    #allocation8 [shape = 'u8[16384]{0}', space=vmem, size = 0x4000, scoped, tag = 'output window, operand 0, single buffered']
    %11 = vsyncpa [#allocation3], 0
    %12 = vsyncpa [#allocation6], 0
    %13 = vsyncpa [#allocation4], 0
    // Predicated region
    $region2: #{time_embedding_forward.1} parent=1 // pred_check
      _
    $region3: #{time_embedding_forward.1} parent=1 // pred_check_branch
      %15 = sbr.rel (0) target = $region5
    $region4: #{time_embedding_forward.1} parent=1 // pred_region
      _
    $region5: #{time_embedding_forward.1} parent=1 // pred_fallthru
      _
    // Predicated region
    $region6: #{time_embedding_forward.1} parent=1 // pred_check
      _
    $region7: #{time_embedding_forward.1} parent=1 // pred_check_branch
      %17 = sbr.rel (0) target = $region9
    $region8: #{time_embedding_forward.1} parent=1 // pred_region
      %s19 = ssub.s32 512, 512
      %20 = vsyncadd [#allocation3], %s19
      %s21 = sshll.u32 [#allocation2], 4
      %s22 = int_to_ptr.vmem [resolvable:$true] %s21
      %27 = dma.hbm_to_vmem [thread:$0]  %s1, 512, %s22, [#allocation3], 128, 128, 8
    $region9: #{time_embedding_forward.1} parent=1 // pred_fallthru
      _
    // Predicated region
    $region10: #{time_embedding_forward.1} parent=1 // pred_check
      _
    $region11: #{time_embedding_forward.1} parent=1 // pred_check_branch
      %29 = sbr.rel (0) target = $region13
    $region12: #{time_embedding_forward.1} parent=1 // pred_region
      %s31 = ssub.s32 4096, 4096
      %32 = vsyncadd [#allocation6], %s31
      %s33 = sshll.u32 [#allocation5], 4
      %s34 = int_to_ptr.vmem [resolvable:$true] %s33
      %39 = dma.hbm_to_vmem [thread:$0]  %s2, 4096, %s34, [#allocation6], 256, 256, 16
    $region13: #{time_embedding_forward.1} parent=1 // pred_fallthru
      _
    // Predicated region
    $region14: #{time_embedding_forward.1} parent=1 // pred_check
      _
    $region15: #{time_embedding_forward.1} parent=1 // pred_check_branch
      %41 = sbr.rel (0) target = $region17
    $region16: #{time_embedding_forward.1} parent=1 // pred_region
      _
    $region17: #{time_embedding_forward.1} parent=1 // pred_fallthru
      _
    // Predicated region
    $region18: #{time_embedding_forward.1} parent=1 // pred_check
      _
    $region19: #{time_embedding_forward.1} parent=1 // pred_check_branch
      %43 = sbr.rel (0) target = $region21
    $region20: #{time_embedding_forward.1} parent=1 // pred_region
      %s45 = ssub.s32 16384, 16384
      %46 = vsyncadd [#allocation6], %s45
      %s47 = sshll.u32 [#allocation7], 4
      %s48 = int_to_ptr.vmem [resolvable:$true] %s47
      %53 = dma.hbm_to_vmem [thread:$0]  %s4, 16384, %s48, [#allocation6], 256, 256, 16
    $region21: #{time_embedding_forward.1} parent=1 // pred_fallthru
      _
    // Predicated region
    $region22: #{time_embedding_forward.1} parent=1 // pred_check
      _
    $region23: #{time_embedding_forward.1} parent=1 // pred_check_branch
      %55 = sbr.rel (0) target = $region25
    $region24: #{time_embedding_forward.1} parent=1 // pred_region
      _
    $region25: #{time_embedding_forward.1} parent=1 // pred_fallthru
      _
    // Predicated region
    $region26: #{time_embedding_forward.1} parent=1 // pred_check
      _
    $region27: #{time_embedding_forward.1} parent=1 // pred_check_branch
      %57 = sbr.rel (0) target = $region29
    $region28: #{time_embedding_forward.1} parent=1 // pred_region
      %58 = dma.done [#allocation3], 512
    $region29: #{time_embedding_forward.1} parent=1 // pred_fallthru
      _
    // Predicated region
    $region30: #{time_embedding_forward.1} parent=1 // pred_check
      _
    $region31: #{time_embedding_forward.1} parent=1 // pred_check_branch
      %60 = sbr.rel (0) target = $region33
    $region32: #{time_embedding_forward.1} parent=1 // pred_region
      %61 = dma.done [#allocation6], 4096
    $region33: #{time_embedding_forward.1} parent=1 // pred_fallthru
      _
    // Predicated region
    $region34: #{time_embedding_forward.1} parent=1 // pred_check
      _
    $region35: #{time_embedding_forward.1} parent=1 // pred_check_branch
      %63 = sbr.rel (0) target = $region37
    $region36: #{time_embedding_forward.1} parent=1 // pred_region
      %64 = dma.done [#allocation6], 16384
    $region37: #{time_embedding_forward.1} parent=1 // pred_fallthru
      _
    %v66 = vlaneseq
    %v67 = vand.u32 %v66, 127
    %v68 = vld [vmem:[%s0] sm:$0xff]
    %69 = vset.pattern.permute.xlu0 0
    %70 = vperm.xlu0 %69, %v68
    %v71 = vpop.permute.xlu0 %70
    %vm72 = vcmp.eq.s32.totalorder %v67, %v71
    %v73 = vsel %vm72, 1, 0
    %v74 = vcvt.s32.f32 %v73
    %v75 = vld [vmem:[#allocation2] sm:$0xff]
    %v76 = vld [vmem:[#allocation2 + $0x8] sm:$0xff]
    %v77 = vld [vmem:[#allocation2 + $0x10] sm:$0xff]
    %v78 = vld [vmem:[#allocation2 + $0x18] sm:$0xff]
    %vm79 = vcmask 261120
    %v81 = vsel %vm79, %v74, 0
    %83 = vmatprep.subr.mxu0 0.0
    %84 = vmatpush1.msra.mxu0 %v75
    %85 = vmatprep.subr.mxu0 0.0
    %86 = vmatpush1.msra.mxu0 %v76
    %87 = vmatprep.subr.mxu0 0.0
    %88 = vmatpush1.msra.mxu0 %v77
    %89 = vmatprep.subr.mxu0 0.0
    %90 = vmatpush1.msra.mxu0 %v78
    %91 = vmatprep.subr.mxu0 0.0
    %92 = vmatpush1.msra.mxu0 0.0
    %93 = vmatprep.subr.mxu0 0.0
    %94 = vmatpush1.msra.mxu0 0.0
    %95 = vmatprep.subr.mxu0 0.0
    %96 = vmatpush1.msra.mxu0 0.0
    %97 = vmatprep.subr.mxu0 0.0
    %98 = vmatpush1.msra.mxu0 0.0
    %99 = vmatprep.subr.mxu0 0.0
    %100 = vmatpush1.msra.mxu0 0.0
    %101 = vmatprep.subr.mxu0 0.0
    %102 = vmatpush1.msra.mxu0 0.0
    %103 = vmatprep.subr.mxu0 0.0
    %104 = vmatpush1.msra.mxu0 0.0
    %105 = vmatprep.subr.mxu0 0.0
    %106 = vmatpush1.msra.mxu0 0.0
    %107 = vmatprep.subr.mxu0 0.0
    %108 = vmatpush1.msra.mxu0 0.0
    %109 = vmatprep.subr.mxu0 0.0
    %110 = vmatpush1.msra.mxu0 0.0
    %111 = vmatprep.subr.mxu0 0.0
    %112 = vmatpush1.msra.mxu0 0.0
    %113 = vmatprep.subr.mxu0 0.0
    %114 = vmatpush1.msra.mxu0 0.0
    %115 = vmatprep.subr.mxu0 0.0
    %116 = vmatpush1.msra.mxu0 0.0
    %117 = vmatprep.subr.mxu0 0.0
    %118 = vmatpush1.msra.mxu0 0.0
    %119 = vmatprep.subr.mxu0 0.0
    %120 = vmatpush1.msra.mxu0 0.0
    %121 = vmatprep.subr.mxu0 0.0
    %122 = vmatpush1.msra.mxu0 0.0
    %123 = vmatprep.subr.mxu0 0.0
    %124 = vmatpush1.msra.mxu0 0.0
    %125 = vmatprep.subr.mxu0 0.0
    %126 = vmatpush1.msra.mxu0 0.0
    %127 = vmatprep.subr.mxu0 0.0
    %128 = vmatpush1.msra.mxu0 0.0
    %129 = vmatprep.subr.mxu0 0.0
    %130 = vmatpush1.msra.mxu0 0.0
    %131 = vmatprep.subr.mxu0 0.0
    %132 = vmatpush1.msra.mxu0 0.0
    %133 = vmatprep.subr.mxu0 0.0
    %134 = vmatpush1.msra.mxu0 0.0
    %135 = vmatprep.subr.mxu0 0.0
    %136 = vmatpush1.msra.mxu0 0.0
    %137 = vmatprep.subr.mxu0 0.0
    %138 = vmatpush1.msra.mxu0 0.0
    %139 = vmatprep.subr.mxu0 0.0
    %140 = vmatpush1.msra.mxu0 0.0
    %141 = vmatprep.subr.mxu0 0.0
    %142 = vmatpush1.msra.mxu0 0.0
    %143 = vmatprep.subr.mxu0 0.0
    %144 = vmatpush1.msra.mxu0 0.0
    %145 = vmatprep.subr.mxu0 0.0
    %146 = vmatpush1.msra.mxu0 0.0
    %147 = vmatprep.mubr.f32.mxu0 0.0
    %148 = vmatmul.mubr.f32.gmra.mrb[0].mxu0 %v81
    %v149 = vpop.f32.mrb[0].mxu0
    %v150 = vadd.f32 0.0, %v149
    %v151 = vpop.f32.mrb[0].mxu0
    %152 = vdwg.mxu0
    %v153 = vpack.c.bf16 %v150, %v150
    %v154 = vld [vmem:[#allocation5] sm:$0xff]
    %v155 = vld [vmem:[#allocation5 + $0x8] sm:$0xff]
    %v156 = vld [vmem:[#allocation5 + $0x10] sm:$0xff]
    %v157 = vld [vmem:[#allocation5 + $0x18] sm:$0xff]
    %v158 = vld [vmem:[#allocation5 + $0x20] sm:$0xff]
    %v159 = vld [vmem:[#allocation5 + $0x28] sm:$0xff]
    %v160 = vld [vmem:[#allocation5 + $0x30] sm:$0xff]
    %v161 = vld [vmem:[#allocation5 + $0x38] sm:$0xff]
    %v162 = vld [vmem:[#allocation5 + $0x40] sm:$0xff]
    %v163 = vld [vmem:[#allocation5 + $0x48] sm:$0xff]
    %v164 = vld [vmem:[#allocation5 + $0x50] sm:$0xff]
    %v165 = vld [vmem:[#allocation5 + $0x58] sm:$0xff]
    %v166 = vld [vmem:[#allocation5 + $0x60] sm:$0xff]
    %v167 = vld [vmem:[#allocation5 + $0x68] sm:$0xff]
    %v168 = vld [vmem:[#allocation5 + $0x70] sm:$0xff]
    %v169 = vld [vmem:[#allocation5 + $0x78] sm:$0xff]
    %v170 = vld [vmem:[#allocation5 + $0x80] sm:$0xff]
    %v171 = vld [vmem:[#allocation5 + $0x88] sm:$0xff]
    %v172 = vld [vmem:[#allocation5 + $0x90] sm:$0xff]
    %v173 = vld [vmem:[#allocation5 + $0x98] sm:$0xff]
    %v174 = vld [vmem:[#allocation5 + $0xa0] sm:$0xff]
    %v175 = vld [vmem:[#allocation5 + $0xa8] sm:$0xff]
    %v176 = vld [vmem:[#allocation5 + $0xb0] sm:$0xff]
    %v177 = vld [vmem:[#allocation5 + $0xb8] sm:$0xff]
    %v178 = vld [vmem:[#allocation5 + $0xc0] sm:$0xff]
    %v179 = vld [vmem:[#allocation5 + $0xc8] sm:$0xff]
    %v180 = vld [vmem:[#allocation5 + $0xd0] sm:$0xff]
    %v181 = vld [vmem:[#allocation5 + $0xd8] sm:$0xff]
    %v182 = vld [vmem:[#allocation5 + $0xe0] sm:$0xff]
    %v183 = vld [vmem:[#allocation5 + $0xe8] sm:$0xff]
    %v184 = vld [vmem:[#allocation5 + $0xf0] sm:$0xff]
    %v185 = vld [vmem:[#allocation5 + $0xf8] sm:$0xff]
    %v186 = vld [vmem:[%s3] sm:$0xf]
    %v188 = vlaneseq
    %v189 = vshrl.u32 %v188, 7
    %v190 = vsub.s32 0, %v189
    %v191 = vrot.slane %v186, %v190
    %v192 = vlaneseq
    %v193 = vshrl.u32 %v192, 7
    %v194 = vsub.s32 1, %v193
    %v195 = vrot.slane %v186, %v194
    %v196 = vlaneseq
    %v197 = vshrl.u32 %v196, 7
    %v198 = vsub.s32 2, %v197
    %v199 = vrot.slane %v186, %v198
    %v200 = vlaneseq
    %v201 = vshrl.u32 %v200, 7
    %v202 = vsub.s32 3, %v201
    %v203 = vrot.slane %v186, %v202
    %v240 = vunpack.c.l.b16 %v154
    %v241 = vunpack.c.h.b16 %v154
    %v242 = vunpack.c.l.b16 %v155
    %v243 = vunpack.c.h.b16 %v155
    %v244 = vunpack.c.l.b16 %v156
    %v245 = vunpack.c.h.b16 %v156
    %v246 = vunpack.c.l.b16 %v157
    %v247 = vunpack.c.h.b16 %v157
    %v248 = vunpack.c.l.b16 %v158
    %v249 = vunpack.c.h.b16 %v158
    %v250 = vunpack.c.l.b16 %v159
    %v251 = vunpack.c.h.b16 %v159
    %v252 = vunpack.c.l.b16 %v160
    %v253 = vunpack.c.h.b16 %v160
    %v254 = vunpack.c.l.b16 %v161
    %v255 = vunpack.c.h.b16 %v161
    %v256 = vunpack.c.l.b16 %v162
    %v257 = vunpack.c.h.b16 %v162
    %v258 = vunpack.c.l.b16 %v163
    %v259 = vunpack.c.h.b16 %v163
    %v260 = vunpack.c.l.b16 %v164
    %v261 = vunpack.c.h.b16 %v164
    %v262 = vunpack.c.l.b16 %v165
    %v263 = vunpack.c.h.b16 %v165
    %v264 = vunpack.c.l.b16 %v166
    %v265 = vunpack.c.h.b16 %v166
    %v266 = vunpack.c.l.b16 %v167
    %v267 = vunpack.c.h.b16 %v167
    %v268 = vunpack.c.l.b16 %v168
    %v269 = vunpack.c.h.b16 %v168
    %v270 = vunpack.c.l.b16 %v169
    %v271 = vunpack.c.h.b16 %v169
    %v272 = vunpack.c.l.b16 %v170
    %v273 = vunpack.c.h.b16 %v170
    %v274 = vunpack.c.l.b16 %v171
    %v275 = vunpack.c.h.b16 %v171
    %v276 = vunpack.c.l.b16 %v172
    %v277 = vunpack.c.h.b16 %v172
    %v278 = vunpack.c.l.b16 %v173
    %v279 = vunpack.c.h.b16 %v173
    %v280 = vunpack.c.l.b16 %v174
    %v281 = vunpack.c.h.b16 %v174
    %v282 = vunpack.c.l.b16 %v175
    %v283 = vunpack.c.h.b16 %v175
    %v284 = vunpack.c.l.b16 %v176
    %v285 = vunpack.c.h.b16 %v176
    %v286 = vunpack.c.l.b16 %v177
    %v287 = vunpack.c.h.b16 %v177
    %v288 = vunpack.c.l.b16 %v178
    %v289 = vunpack.c.h.b16 %v178
    %v290 = vunpack.c.l.b16 %v179
    %v291 = vunpack.c.h.b16 %v179
    %v292 = vunpack.c.l.b16 %v180
    %v293 = vunpack.c.h.b16 %v180
    %v294 = vunpack.c.l.b16 %v181
    %v295 = vunpack.c.h.b16 %v181
    %v296 = vunpack.c.l.b16 %v182
    %v297 = vunpack.c.h.b16 %v182
    %v298 = vunpack.c.l.b16 %v183
    %v299 = vunpack.c.h.b16 %v183
    %v300 = vunpack.c.l.b16 %v184
    %v301 = vunpack.c.h.b16 %v184
    %v302 = vunpack.c.l.b16 %v185
    %v303 = vunpack.c.h.b16 %v185
    %v304 = vpack.c.b16 %v244, %v240
    %v305 = vpack.c.b16 %v245, %v241
    %v306 = vpack.c.b16 %v246, %v242
    %v307 = vpack.c.b16 %v247, %v243
    %v308 = vpack.c.b16 %v252, %v248
    %v309 = vpack.c.b16 %v253, %v249
    %v310 = vpack.c.b16 %v254, %v250
    %v311 = vpack.c.b16 %v255, %v251
    %v312 = vpack.c.b16 %v260, %v256
    %v313 = vpack.c.b16 %v261, %v257
    %v314 = vpack.c.b16 %v262, %v258
    %v315 = vpack.c.b16 %v263, %v259
    %v316 = vpack.c.b16 %v268, %v264
    %v317 = vpack.c.b16 %v269, %v265
    %v318 = vpack.c.b16 %v270, %v266
    %v319 = vpack.c.b16 %v271, %v267
    %v320 = vpack.c.b16 %v276, %v272
    %v321 = vpack.c.b16 %v277, %v273
    %v322 = vpack.c.b16 %v278, %v274
    %v323 = vpack.c.b16 %v279, %v275
    %v324 = vpack.c.b16 %v284, %v280
    %v325 = vpack.c.b16 %v285, %v281
    %v326 = vpack.c.b16 %v286, %v282
    %v327 = vpack.c.b16 %v287, %v283
    %v328 = vpack.c.b16 %v292, %v288
    %v329 = vpack.c.b16 %v293, %v289
    %v330 = vpack.c.b16 %v294, %v290
    %v331 = vpack.c.b16 %v295, %v291
    %v332 = vpack.c.b16 %v300, %v296
    %v333 = vpack.c.b16 %v301, %v297
    %v334 = vpack.c.b16 %v302, %v298
    %v335 = vpack.c.b16 %v303, %v299
    %368 = vmatprep.subr.bf16.mxu0 %v305
    %369 = vmatpush1.bf16.msra.mxu0 %v304
    %370 = vmatprep.subr.bf16.mxu0 %v309
    %371 = vmatpush1.bf16.msra.mxu0 %v308
    %372 = vmatprep.subr.bf16.mxu0 %v313
    %373 = vmatpush1.bf16.msra.mxu0 %v312
    %374 = vmatprep.subr.bf16.mxu0 %v317
    %375 = vmatpush1.bf16.msra.mxu0 %v316
    %376 = vmatprep.subr.bf16.mxu0 %v321
    %377 = vmatpush1.bf16.msra.mxu0 %v320
    %378 = vmatprep.subr.bf16.mxu0 %v325
    %379 = vmatpush1.bf16.msra.mxu0 %v324
    %380 = vmatprep.subr.bf16.mxu0 %v329
    %381 = vmatpush1.bf16.msra.mxu0 %v328
    %382 = vmatprep.subr.bf16.mxu0 %v333
    %383 = vmatpush1.bf16.msra.mxu0 %v332
    %384 = vmatprep.subr.bf16.mxu0 0
    %385 = vmatpush1.bf16.msra.mxu0 0
    %386 = vmatprep.subr.bf16.mxu0 0
    %387 = vmatpush1.bf16.msra.mxu0 0
    %388 = vmatprep.subr.bf16.mxu0 0
    %389 = vmatpush1.bf16.msra.mxu0 0
    %390 = vmatprep.subr.bf16.mxu0 0
    %391 = vmatpush1.bf16.msra.mxu0 0
    %392 = vmatprep.subr.bf16.mxu0 0
    %393 = vmatpush1.bf16.msra.mxu0 0
    %394 = vmatprep.subr.bf16.mxu0 0
    %395 = vmatpush1.bf16.msra.mxu0 0
    %396 = vmatprep.subr.bf16.mxu0 0
    %397 = vmatpush1.bf16.msra.mxu0 0
    %398 = vmatprep.subr.bf16.mxu0 0
    %399 = vmatpush1.bf16.msra.mxu0 0
    %400 = vmatprep.mubr.bf16.mxu0 0
    %401 = vmatmul.mubr.bf16.gmra.mrb[0].mxu0 %v153
    %v402 = vpop.f32.mrb[0].mxu0
    %v403 = vadd.f32 %v191, %v402
    %v404 = vpop.f32.mrb[0].mxu0
    %v405 = vadd.f32 %v195, %v404
    %v406 = vpop.f32.mrb[0].mxu0
    %v407 = vpop.f32.mrb[0].mxu0
    %408 = vdwg.mxu0
    %409 = vmatprep.subr.bf16.mxu0 %v307
    %410 = vmatpush1.bf16.msra.mxu0 %v306
    %411 = vmatprep.subr.bf16.mxu0 %v311
    %412 = vmatpush1.bf16.msra.mxu0 %v310
    %413 = vmatprep.subr.bf16.mxu0 %v315
    %414 = vmatpush1.bf16.msra.mxu0 %v314
    %415 = vmatprep.subr.bf16.mxu0 %v319
    %416 = vmatpush1.bf16.msra.mxu0 %v318
    %417 = vmatprep.subr.bf16.mxu0 %v323
    %418 = vmatpush1.bf16.msra.mxu0 %v322
    %419 = vmatprep.subr.bf16.mxu0 %v327
    %420 = vmatpush1.bf16.msra.mxu0 %v326
    %421 = vmatprep.subr.bf16.mxu0 %v331
    %422 = vmatpush1.bf16.msra.mxu0 %v330
    %423 = vmatprep.subr.bf16.mxu0 %v335
    %424 = vmatpush1.bf16.msra.mxu0 %v334
    %425 = vmatprep.subr.bf16.mxu0 0
    %426 = vmatpush1.bf16.msra.mxu0 0
    %427 = vmatprep.subr.bf16.mxu0 0
    %428 = vmatpush1.bf16.msra.mxu0 0
    %429 = vmatprep.subr.bf16.mxu0 0
    %430 = vmatpush1.bf16.msra.mxu0 0
    %431 = vmatprep.subr.bf16.mxu0 0
    %432 = vmatpush1.bf16.msra.mxu0 0
    %433 = vmatprep.subr.bf16.mxu0 0
    %434 = vmatpush1.bf16.msra.mxu0 0
    %435 = vmatprep.subr.bf16.mxu0 0
    %436 = vmatpush1.bf16.msra.mxu0 0
    %437 = vmatprep.subr.bf16.mxu0 0
    %438 = vmatpush1.bf16.msra.mxu0 0
    %439 = vmatprep.subr.bf16.mxu0 0
    %440 = vmatpush1.bf16.msra.mxu0 0
    %441 = vmatprep.mubr.bf16.mxu0 0
    %442 = vmatmul.mubr.bf16.gmra.mrb[0].mxu0 %v153
    %v443 = vpop.f32.mrb[0].mxu0
    %v444 = vadd.f32 %v199, %v443
    %v445 = vpop.f32.mrb[0].mxu0
    %v446 = vadd.f32 %v203, %v445
    %v447 = vpop.f32.mrb[0].mxu0
    %v448 = vpop.f32.mrb[0].mxu0
    %449 = vdwg.mxu0
    %v450 = vxor.u32 %v403, 2147483648
    %v451 = vxor.u32 %v405, 2147483648
    %v452 = vxor.u32 %v444, 2147483648
    %v453 = vxor.u32 %v446, 2147483648
    %v454 = vmul.f32 %v450, 1.442695
    %v455 = vpow.pop %v454
    %v456 = vmul.f32 %v451, 1.442695
    %v457 = vpow.pop %v456
    %v458 = vmul.f32 %v452, 1.442695
    %v459 = vpow.pop %v458
    %v460 = vmul.f32 %v453, 1.442695
    %v461 = vpow.pop %v460
    %v462 = vadd.f32 %v455, 1.0
    %v463 = vadd.f32 %v457, 1.0
    %v464 = vadd.f32 %v459, 1.0
    %v465 = vadd.f32 %v461, 1.0
    %v466 = vrcp.pop %v462
    %v467 = vmul.f32 1.0, %v466
    %v468 = vrcp.pop %v463
    %v469 = vmul.f32 1.0, %v468
    %v470 = vrcp.pop %v464
    %v471 = vmul.f32 1.0, %v470
    %v472 = vrcp.pop %v465
    %v473 = vmul.f32 1.0, %v472
    %v474 = vmul.f32 %v403, %v467
    %v475 = vmul.f32 %v405, %v469
    %v476 = vmul.f32 %v444, %v471
    %v477 = vmul.f32 %v446, %v473
    %v478 = vpack.c.bf16 %v474, %v474
    %v479 = vpack.c.bf16 %v475, %v475
    %v480 = vpack.c.bf16 %v476, %v476
    %v481 = vpack.c.bf16 %v477, %v477
    %v482 = vld [vmem:[#allocation7] sm:$0xff]
    %v483 = vld [vmem:[#allocation7 + $0x8] sm:$0xff]
    %v484 = vld [vmem:[#allocation7 + $0x10] sm:$0xff]
    %v485 = vld [vmem:[#allocation7 + $0x18] sm:$0xff]
    %v486 = vld [vmem:[#allocation7 + $0x20] sm:$0xff]
    %v487 = vld [vmem:[#allocation7 + $0x28] sm:$0xff]
    %v488 = vld [vmem:[#allocation7 + $0x30] sm:$0xff]
    %v489 = vld [vmem:[#allocation7 + $0x38] sm:$0xff]
    %v490 = vld [vmem:[#allocation7 + $0x40] sm:$0xff]
    %v491 = vld [vmem:[#allocation7 + $0x48] sm:$0xff]
    %v492 = vld [vmem:[#allocation7 + $0x50] sm:$0xff]
    %v493 = vld [vmem:[#allocation7 + $0x58] sm:$0xff]
    %v494 = vld [vmem:[#allocation7 + $0x60] sm:$0xff]
    %v495 = vld [vmem:[#allocation7 + $0x68] sm:$0xff]
    %v496 = vld [vmem:[#allocation7 + $0x70] sm:$0xff]
    %v497 = vld [vmem:[#allocation7 + $0x78] sm:$0xff]
    %v498 = vld [vmem:[#allocation7 + $0x80] sm:$0xff]
    %v499 = vld [vmem:[#allocation7 + $0x88] sm:$0xff]
    %v500 = vld [vmem:[#allocation7 + $0x90] sm:$0xff]
    %v501 = vld [vmem:[#allocation7 + $0x98] sm:$0xff]
    %v502 = vld [vmem:[#allocation7 + $0xa0] sm:$0xff]
    %v503 = vld [vmem:[#allocation7 + $0xa8] sm:$0xff]
    %v504 = vld [vmem:[#allocation7 + $0xb0] sm:$0xff]
    %v505 = vld [vmem:[#allocation7 + $0xb8] sm:$0xff]
    %v506 = vld [vmem:[#allocation7 + $0xc0] sm:$0xff]
    %v507 = vld [vmem:[#allocation7 + $0xc8] sm:$0xff]
    %v508 = vld [vmem:[#allocation7 + $0xd0] sm:$0xff]
    %v509 = vld [vmem:[#allocation7 + $0xd8] sm:$0xff]
    %v510 = vld [vmem:[#allocation7 + $0xe0] sm:$0xff]
    %v511 = vld [vmem:[#allocation7 + $0xe8] sm:$0xff]
    %v512 = vld [vmem:[#allocation7 + $0xf0] sm:$0xff]
    %v513 = vld [vmem:[#allocation7 + $0xf8] sm:$0xff]
    %v514 = vld [vmem:[#allocation7 + $0x100] sm:$0xff]
    %v515 = vld [vmem:[#allocation7 + $0x108] sm:$0xff]
    %v516 = vld [vmem:[#allocation7 + $0x110] sm:$0xff]
    %v517 = vld [vmem:[#allocation7 + $0x118] sm:$0xff]
    %v518 = vld [vmem:[#allocation7 + $0x120] sm:$0xff]
    %v519 = vld [vmem:[#allocation7 + $0x128] sm:$0xff]
    %v520 = vld [vmem:[#allocation7 + $0x130] sm:$0xff]
    %v521 = vld [vmem:[#allocation7 + $0x138] sm:$0xff]
    %v522 = vld [vmem:[#allocation7 + $0x140] sm:$0xff]
    %v523 = vld [vmem:[#allocation7 + $0x148] sm:$0xff]
    %v524 = vld [vmem:[#allocation7 + $0x150] sm:$0xff]
    %v525 = vld [vmem:[#allocation7 + $0x158] sm:$0xff]
    %v526 = vld [vmem:[#allocation7 + $0x160] sm:$0xff]
    %v527 = vld [vmem:[#allocation7 + $0x168] sm:$0xff]
    %v528 = vld [vmem:[#allocation7 + $0x170] sm:$0xff]
    %v529 = vld [vmem:[#allocation7 + $0x178] sm:$0xff]
    %v530 = vld [vmem:[#allocation7 + $0x180] sm:$0xff]
    %v531 = vld [vmem:[#allocation7 + $0x188] sm:$0xff]
    %v532 = vld [vmem:[#allocation7 + $0x190] sm:$0xff]
    %v533 = vld [vmem:[#allocation7 + $0x198] sm:$0xff]
    %v534 = vld [vmem:[#allocation7 + $0x1a0] sm:$0xff]
    %v535 = vld [vmem:[#allocation7 + $0x1a8] sm:$0xff]
    %v536 = vld [vmem:[#allocation7 + $0x1b0] sm:$0xff]
    %v537 = vld [vmem:[#allocation7 + $0x1b8] sm:$0xff]
    %v538 = vld [vmem:[#allocation7 + $0x1c0] sm:$0xff]
    %v539 = vld [vmem:[#allocation7 + $0x1c8] sm:$0xff]
    %v540 = vld [vmem:[#allocation7 + $0x1d0] sm:$0xff]
    %v541 = vld [vmem:[#allocation7 + $0x1d8] sm:$0xff]
    %v542 = vld [vmem:[#allocation7 + $0x1e0] sm:$0xff]
    %v543 = vld [vmem:[#allocation7 + $0x1e8] sm:$0xff]
    %v544 = vld [vmem:[#allocation7 + $0x1f0] sm:$0xff]
    %v545 = vld [vmem:[#allocation7 + $0x1f8] sm:$0xff]
    %v546 = vld [vmem:[#allocation7 + $0x200] sm:$0xff]
    %v547 = vld [vmem:[#allocation7 + $0x208] sm:$0xff]
    %v548 = vld [vmem:[#allocation7 + $0x210] sm:$0xff]
    %v549 = vld [vmem:[#allocation7 + $0x218] sm:$0xff]
    %v550 = vld [vmem:[#allocation7 + $0x220] sm:$0xff]
    %v551 = vld [vmem:[#allocation7 + $0x228] sm:$0xff]
    %v552 = vld [vmem:[#allocation7 + $0x230] sm:$0xff]
    %v553 = vld [vmem:[#allocation7 + $0x238] sm:$0xff]
    %v554 = vld [vmem:[#allocation7 + $0x240] sm:$0xff]
    %v555 = vld [vmem:[#allocation7 + $0x248] sm:$0xff]
    %v556 = vld [vmem:[#allocation7 + $0x250] sm:$0xff]
    %v557 = vld [vmem:[#allocation7 + $0x258] sm:$0xff]
    %v558 = vld [vmem:[#allocation7 + $0x260] sm:$0xff]
    %v559 = vld [vmem:[#allocation7 + $0x268] sm:$0xff]
    %v560 = vld [vmem:[#allocation7 + $0x270] sm:$0xff]
    %v561 = vld [vmem:[#allocation7 + $0x278] sm:$0xff]
    %v562 = vld [vmem:[#allocation7 + $0x280] sm:$0xff]
    %v563 = vld [vmem:[#allocation7 + $0x288] sm:$0xff]
    %v564 = vld [vmem:[#allocation7 + $0x290] sm:$0xff]
    %v565 = vld [vmem:[#allocation7 + $0x298] sm:$0xff]
    %v566 = vld [vmem:[#allocation7 + $0x2a0] sm:$0xff]
    %v567 = vld [vmem:[#allocation7 + $0x2a8] sm:$0xff]
    %v568 = vld [vmem:[#allocation7 + $0x2b0] sm:$0xff]
    %v569 = vld [vmem:[#allocation7 + $0x2b8] sm:$0xff]
    %v570 = vld [vmem:[#allocation7 + $0x2c0] sm:$0xff]
    %v571 = vld [vmem:[#allocation7 + $0x2c8] sm:$0xff]
    %v572 = vld [vmem:[#allocation7 + $0x2d0] sm:$0xff]
    %v573 = vld [vmem:[#allocation7 + $0x2d8] sm:$0xff]
    %v574 = vld [vmem:[#allocation7 + $0x2e0] sm:$0xff]
    %v575 = vld [vmem:[#allocation7 + $0x2e8] sm:$0xff]
    %v576 = vld [vmem:[#allocation7 + $0x2f0] sm:$0xff]
    %v577 = vld [vmem:[#allocation7 + $0x2f8] sm:$0xff]
    %v578 = vld [vmem:[#allocation7 + $0x300] sm:$0xff]
    %v579 = vld [vmem:[#allocation7 + $0x308] sm:$0xff]
    %v580 = vld [vmem:[#allocation7 + $0x310] sm:$0xff]
    %v581 = vld [vmem:[#allocation7 + $0x318] sm:$0xff]
    %v582 = vld [vmem:[#allocation7 + $0x320] sm:$0xff]
    %v583 = vld [vmem:[#allocation7 + $0x328] sm:$0xff]
    %v584 = vld [vmem:[#allocation7 + $0x330] sm:$0xff]
    %v585 = vld [vmem:[#allocation7 + $0x338] sm:$0xff]
    %v586 = vld [vmem:[#allocation7 + $0x340] sm:$0xff]
    %v587 = vld [vmem:[#allocation7 + $0x348] sm:$0xff]
    %v588 = vld [vmem:[#allocation7 + $0x350] sm:$0xff]
    %v589 = vld [vmem:[#allocation7 + $0x358] sm:$0xff]
    %v590 = vld [vmem:[#allocation7 + $0x360] sm:$0xff]
    %v591 = vld [vmem:[#allocation7 + $0x368] sm:$0xff]
    %v592 = vld [vmem:[#allocation7 + $0x370] sm:$0xff]
    %v593 = vld [vmem:[#allocation7 + $0x378] sm:$0xff]
    %v594 = vld [vmem:[#allocation7 + $0x380] sm:$0xff]
    %v595 = vld [vmem:[#allocation7 + $0x388] sm:$0xff]
    %v596 = vld [vmem:[#allocation7 + $0x390] sm:$0xff]
    %v597 = vld [vmem:[#allocation7 + $0x398] sm:$0xff]
    %v598 = vld [vmem:[#allocation7 + $0x3a0] sm:$0xff]
    %v599 = vld [vmem:[#allocation7 + $0x3a8] sm:$0xff]
    %v600 = vld [vmem:[#allocation7 + $0x3b0] sm:$0xff]
    %v601 = vld [vmem:[#allocation7 + $0x3b8] sm:$0xff]
    %v602 = vld [vmem:[#allocation7 + $0x3c0] sm:$0xff]
    %v603 = vld [vmem:[#allocation7 + $0x3c8] sm:$0xff]
    %v604 = vld [vmem:[#allocation7 + $0x3d0] sm:$0xff]
    %v605 = vld [vmem:[#allocation7 + $0x3d8] sm:$0xff]
    %v606 = vld [vmem:[#allocation7 + $0x3e0] sm:$0xff]
    %v607 = vld [vmem:[#allocation7 + $0x3e8] sm:$0xff]
    %v608 = vld [vmem:[#allocation7 + $0x3f0] sm:$0xff]
    %v609 = vld [vmem:[#allocation7 + $0x3f8] sm:$0xff]
    %v610 = vld [vmem:[%s5] sm:$0xf]
    %v612 = vlaneseq
    %v613 = vshrl.u32 %v612, 7
    %v614 = vsub.s32 0, %v613
    %v615 = vrot.slane %v610, %v614
    %v616 = vlaneseq
    %v617 = vshrl.u32 %v616, 7
    %v618 = vsub.s32 1, %v617
    %v619 = vrot.slane %v610, %v618
    %v620 = vlaneseq
    %v621 = vshrl.u32 %v620, 7
    %v622 = vsub.s32 2, %v621
    %v623 = vrot.slane %v610, %v622
    %v624 = vlaneseq
    %v625 = vshrl.u32 %v624, 7
    %v626 = vsub.s32 3, %v625
    %v627 = vrot.slane %v610, %v626
    %v760 = vunpack.c.l.b16 %v482
    %v761 = vunpack.c.h.b16 %v482
    %v762 = vunpack.c.l.b16 %v483
    %v763 = vunpack.c.h.b16 %v483
    %v764 = vunpack.c.l.b16 %v484
    %v765 = vunpack.c.h.b16 %v484
    %v766 = vunpack.c.l.b16 %v485
    %v767 = vunpack.c.h.b16 %v485
    %v768 = vunpack.c.l.b16 %v486
    %v769 = vunpack.c.h.b16 %v486
    %v770 = vunpack.c.l.b16 %v487
    %v771 = vunpack.c.h.b16 %v487
    %v772 = vunpack.c.l.b16 %v488
    %v773 = vunpack.c.h.b16 %v488
    %v774 = vunpack.c.l.b16 %v489
    %v775 = vunpack.c.h.b16 %v489
    %v776 = vunpack.c.l.b16 %v490
    %v777 = vunpack.c.h.b16 %v490
    %v778 = vunpack.c.l.b16 %v491
    %v779 = vunpack.c.h.b16 %v491
    %v780 = vunpack.c.l.b16 %v492
    %v781 = vunpack.c.h.b16 %v492
    %v782 = vunpack.c.l.b16 %v493
    %v783 = vunpack.c.h.b16 %v493
    %v784 = vunpack.c.l.b16 %v494
    %v785 = vunpack.c.h.b16 %v494
    %v786 = vunpack.c.l.b16 %v495
    %v787 = vunpack.c.h.b16 %v495
    %v788 = vunpack.c.l.b16 %v496
    %v789 = vunpack.c.h.b16 %v496
    %v790 = vunpack.c.l.b16 %v497
    %v791 = vunpack.c.h.b16 %v497
    %v792 = vunpack.c.l.b16 %v498
    %v793 = vunpack.c.h.b16 %v498
    %v794 = vunpack.c.l.b16 %v499
    %v795 = vunpack.c.h.b16 %v499
    %v796 = vunpack.c.l.b16 %v500
    %v797 = vunpack.c.h.b16 %v500
    %v798 = vunpack.c.l.b16 %v501
    %v799 = vunpack.c.h.b16 %v501
    %v800 = vunpack.c.l.b16 %v502
    %v801 = vunpack.c.h.b16 %v502
    %v802 = vunpack.c.l.b16 %v503
    %v803 = vunpack.c.h.b16 %v503
    %v804 = vunpack.c.l.b16 %v504
    %v805 = vunpack.c.h.b16 %v504
    %v806 = vunpack.c.l.b16 %v505
    %v807 = vunpack.c.h.b16 %v505
    %v808 = vunpack.c.l.b16 %v506
    %v809 = vunpack.c.h.b16 %v506
    %v810 = vunpack.c.l.b16 %v507
    %v811 = vunpack.c.h.b16 %v507
    %v812 = vunpack.c.l.b16 %v508
    %v813 = vunpack.c.h.b16 %v508
    %v814 = vunpack.c.l.b16 %v509
    %v815 = vunpack.c.h.b16 %v509
    %v816 = vunpack.c.l.b16 %v510
    %v817 = vunpack.c.h.b16 %v510
    %v818 = vunpack.c.l.b16 %v511
    %v819 = vunpack.c.h.b16 %v511
    %v820 = vunpack.c.l.b16 %v512
    %v821 = vunpack.c.h.b16 %v512
    %v822 = vunpack.c.l.b16 %v513
    %v823 = vunpack.c.h.b16 %v513
    %v824 = vunpack.c.l.b16 %v514
    %v825 = vunpack.c.h.b16 %v514
    %v826 = vunpack.c.l.b16 %v515
    %v827 = vunpack.c.h.b16 %v515
    %v828 = vunpack.c.l.b16 %v516
    %v829 = vunpack.c.h.b16 %v516
    %v830 = vunpack.c.l.b16 %v517
    %v831 = vunpack.c.h.b16 %v517
    %v832 = vunpack.c.l.b16 %v518
    %v833 = vunpack.c.h.b16 %v518
    %v834 = vunpack.c.l.b16 %v519
    %v835 = vunpack.c.h.b16 %v519
    %v836 = vunpack.c.l.b16 %v520
    %v837 = vunpack.c.h.b16 %v520
    %v838 = vunpack.c.l.b16 %v521
    %v839 = vunpack.c.h.b16 %v521
    %v840 = vunpack.c.l.b16 %v522
    %v841 = vunpack.c.h.b16 %v522
    %v842 = vunpack.c.l.b16 %v523
    %v843 = vunpack.c.h.b16 %v523
    %v844 = vunpack.c.l.b16 %v524
    %v845 = vunpack.c.h.b16 %v524
    %v846 = vunpack.c.l.b16 %v525
    %v847 = vunpack.c.h.b16 %v525
    %v848 = vunpack.c.l.b16 %v526
    %v849 = vunpack.c.h.b16 %v526
    %v850 = vunpack.c.l.b16 %v527
    %v851 = vunpack.c.h.b16 %v527
    %v852 = vunpack.c.l.b16 %v528
    %v853 = vunpack.c.h.b16 %v528
    %v854 = vunpack.c.l.b16 %v529
    %v855 = vunpack.c.h.b16 %v529
    %v856 = vunpack.c.l.b16 %v530
    %v857 = vunpack.c.h.b16 %v530
    %v858 = vunpack.c.l.b16 %v531
    %v859 = vunpack.c.h.b16 %v531
    %v860 = vunpack.c.l.b16 %v532
    %v861 = vunpack.c.h.b16 %v532
    %v862 = vunpack.c.l.b16 %v533
    %v863 = vunpack.c.h.b16 %v533
    %v864 = vunpack.c.l.b16 %v534
    %v865 = vunpack.c.h.b16 %v534
    %v866 = vunpack.c.l.b16 %v535
    %v867 = vunpack.c.h.b16 %v535
    %v868 = vunpack.c.l.b16 %v536
    %v869 = vunpack.c.h.b16 %v536
    %v870 = vunpack.c.l.b16 %v537
    %v871 = vunpack.c.h.b16 %v537
    %v872 = vunpack.c.l.b16 %v538
    %v873 = vunpack.c.h.b16 %v538
    %v874 = vunpack.c.l.b16 %v539
    %v875 = vunpack.c.h.b16 %v539
    %v876 = vunpack.c.l.b16 %v540
    %v877 = vunpack.c.h.b16 %v540
    %v878 = vunpack.c.l.b16 %v541
    %v879 = vunpack.c.h.b16 %v541
    %v880 = vunpack.c.l.b16 %v542
    %v881 = vunpack.c.h.b16 %v542
    %v882 = vunpack.c.l.b16 %v543
    %v883 = vunpack.c.h.b16 %v543
    %v884 = vunpack.c.l.b16 %v544
    %v885 = vunpack.c.h.b16 %v544
    %v886 = vunpack.c.l.b16 %v545
    %v887 = vunpack.c.h.b16 %v545
    %v888 = vunpack.c.l.b16 %v546
    %v889 = vunpack.c.h.b16 %v546
    %v890 = vunpack.c.l.b16 %v547
    %v891 = vunpack.c.h.b16 %v547
    %v892 = vunpack.c.l.b16 %v548
    %v893 = vunpack.c.h.b16 %v548
    %v894 = vunpack.c.l.b16 %v549
    %v895 = vunpack.c.h.b16 %v549
    %v896 = vunpack.c.l.b16 %v550
    %v897 = vunpack.c.h.b16 %v550
    %v898 = vunpack.c.l.b16 %v551
    %v899 = vunpack.c.h.b16 %v551
    %v900 = vunpack.c.l.b16 %v552
    %v901 = vunpack.c.h.b16 %v552
    %v902 = vunpack.c.l.b16 %v553
    %v903 = vunpack.c.h.b16 %v553
    %v904 = vunpack.c.l.b16 %v554
    %v905 = vunpack.c.h.b16 %v554
    %v906 = vunpack.c.l.b16 %v555
    %v907 = vunpack.c.h.b16 %v555
    %v908 = vunpack.c.l.b16 %v556
    %v909 = vunpack.c.h.b16 %v556
    %v910 = vunpack.c.l.b16 %v557
    %v911 = vunpack.c.h.b16 %v557
    %v912 = vunpack.c.l.b16 %v558
    %v913 = vunpack.c.h.b16 %v558
    %v914 = vunpack.c.l.b16 %v559
    %v915 = vunpack.c.h.b16 %v559
    %v916 = vunpack.c.l.b16 %v560
    %v917 = vunpack.c.h.b16 %v560
    %v918 = vunpack.c.l.b16 %v561
    %v919 = vunpack.c.h.b16 %v561
    %v920 = vunpack.c.l.b16 %v562
    %v921 = vunpack.c.h.b16 %v562
    %v922 = vunpack.c.l.b16 %v563
    %v923 = vunpack.c.h.b16 %v563
    %v924 = vunpack.c.l.b16 %v564
    %v925 = vunpack.c.h.b16 %v564
    %v926 = vunpack.c.l.b16 %v565
    %v927 = vunpack.c.h.b16 %v565
    %v928 = vunpack.c.l.b16 %v566
    %v929 = vunpack.c.h.b16 %v566
    %v930 = vunpack.c.l.b16 %v567
    %v931 = vunpack.c.h.b16 %v567
    %v932 = vunpack.c.l.b16 %v568
    %v933 = vunpack.c.h.b16 %v568
    %v934 = vunpack.c.l.b16 %v569
    %v935 = vunpack.c.h.b16 %v569
    %v936 = vunpack.c.l.b16 %v570
    %v937 = vunpack.c.h.b16 %v570
    %v938 = vunpack.c.l.b16 %v571
    %v939 = vunpack.c.h.b16 %v571
    %v940 = vunpack.c.l.b16 %v572
    %v941 = vunpack.c.h.b16 %v572
    %v942 = vunpack.c.l.b16 %v573
    %v943 = vunpack.c.h.b16 %v573
    %v944 = vunpack.c.l.b16 %v574
    %v945 = vunpack.c.h.b16 %v574
    %v946 = vunpack.c.l.b16 %v575
    %v947 = vunpack.c.h.b16 %v575
    %v948 = vunpack.c.l.b16 %v576
    %v949 = vunpack.c.h.b16 %v576
    %v950 = vunpack.c.l.b16 %v577
    %v951 = vunpack.c.h.b16 %v577
    %v952 = vunpack.c.l.b16 %v578
    %v953 = vunpack.c.h.b16 %v578
    %v954 = vunpack.c.l.b16 %v579
    %v955 = vunpack.c.h.b16 %v579
    %v956 = vunpack.c.l.b16 %v580
    %v957 = vunpack.c.h.b16 %v580
    %v958 = vunpack.c.l.b16 %v581
    %v959 = vunpack.c.h.b16 %v581
    %v960 = vunpack.c.l.b16 %v582
    %v961 = vunpack.c.h.b16 %v582
    %v962 = vunpack.c.l.b16 %v583
    %v963 = vunpack.c.h.b16 %v583
    %v964 = vunpack.c.l.b16 %v584
    %v965 = vunpack.c.h.b16 %v584
    %v966 = vunpack.c.l.b16 %v585
    %v967 = vunpack.c.h.b16 %v585
    %v968 = vunpack.c.l.b16 %v586
    %v969 = vunpack.c.h.b16 %v586
    %v970 = vunpack.c.l.b16 %v587
    %v971 = vunpack.c.h.b16 %v587
    %v972 = vunpack.c.l.b16 %v588
    %v973 = vunpack.c.h.b16 %v588
    %v974 = vunpack.c.l.b16 %v589
    %v975 = vunpack.c.h.b16 %v589
    %v976 = vunpack.c.l.b16 %v590
    %v977 = vunpack.c.h.b16 %v590
    %v978 = vunpack.c.l.b16 %v591
    %v979 = vunpack.c.h.b16 %v591
    %v980 = vunpack.c.l.b16 %v592
    %v981 = vunpack.c.h.b16 %v592
    %v982 = vunpack.c.l.b16 %v593
    %v983 = vunpack.c.h.b16 %v593
    %v984 = vunpack.c.l.b16 %v594
    %v985 = vunpack.c.h.b16 %v594
    %v986 = vunpack.c.l.b16 %v595
    %v987 = vunpack.c.h.b16 %v595
    %v988 = vunpack.c.l.b16 %v596
    %v989 = vunpack.c.h.b16 %v596
    %v990 = vunpack.c.l.b16 %v597
    %v991 = vunpack.c.h.b16 %v597
    %v992 = vunpack.c.l.b16 %v598
    %v993 = vunpack.c.h.b16 %v598
    %v994 = vunpack.c.l.b16 %v599
    %v995 = vunpack.c.h.b16 %v599
    %v996 = vunpack.c.l.b16 %v600
    %v997 = vunpack.c.h.b16 %v600
    %v998 = vunpack.c.l.b16 %v601
    %v999 = vunpack.c.h.b16 %v601
    %v1000 = vunpack.c.l.b16 %v602
    %v1001 = vunpack.c.h.b16 %v602
    %v1002 = vunpack.c.l.b16 %v603
    %v1003 = vunpack.c.h.b16 %v603
    %v1004 = vunpack.c.l.b16 %v604
    %v1005 = vunpack.c.h.b16 %v604
    %v1006 = vunpack.c.l.b16 %v605
    %v1007 = vunpack.c.h.b16 %v605
    %v1008 = vunpack.c.l.b16 %v606
    %v1009 = vunpack.c.h.b16 %v606
    %v1010 = vunpack.c.l.b16 %v607
    %v1011 = vunpack.c.h.b16 %v607
    %v1012 = vunpack.c.l.b16 %v608
    %v1013 = vunpack.c.h.b16 %v608
    %v1014 = vunpack.c.l.b16 %v609
    %v1015 = vunpack.c.h.b16 %v609
    %v1016 = vpack.c.b16 %v764, %v760
    %v1017 = vpack.c.b16 %v765, %v761
    %v1018 = vpack.c.b16 %v766, %v762
    %v1019 = vpack.c.b16 %v767, %v763
    %v1020 = vpack.c.b16 %v772, %v768
    %v1021 = vpack.c.b16 %v773, %v769
    %v1022 = vpack.c.b16 %v774, %v770
    %v1023 = vpack.c.b16 %v775, %v771
    %v1024 = vpack.c.b16 %v780, %v776
    %v1025 = vpack.c.b16 %v781, %v777
    %v1026 = vpack.c.b16 %v782, %v778
    %v1027 = vpack.c.b16 %v783, %v779
    %v1028 = vpack.c.b16 %v788, %v784
    %v1029 = vpack.c.b16 %v789, %v785
    %v1030 = vpack.c.b16 %v790, %v786
    %v1031 = vpack.c.b16 %v791, %v787
    %v1032 = vpack.c.b16 %v796, %v792
    %v1033 = vpack.c.b16 %v797, %v793
    %v1034 = vpack.c.b16 %v798, %v794
    %v1035 = vpack.c.b16 %v799, %v795
    %v1036 = vpack.c.b16 %v804, %v800
    %v1037 = vpack.c.b16 %v805, %v801
    %v1038 = vpack.c.b16 %v806, %v802
    %v1039 = vpack.c.b16 %v807, %v803
    %v1040 = vpack.c.b16 %v812, %v808
    %v1041 = vpack.c.b16 %v813, %v809
    %v1042 = vpack.c.b16 %v814, %v810
    %v1043 = vpack.c.b16 %v815, %v811
    %v1044 = vpack.c.b16 %v820, %v816
    %v1045 = vpack.c.b16 %v821, %v817
    %v1046 = vpack.c.b16 %v822, %v818
    %v1047 = vpack.c.b16 %v823, %v819
    %v1048 = vpack.c.b16 %v828, %v824
    %v1049 = vpack.c.b16 %v829, %v825
    %v1050 = vpack.c.b16 %v830, %v826
    %v1051 = vpack.c.b16 %v831, %v827
    %v1052 = vpack.c.b16 %v836, %v832
    %v1053 = vpack.c.b16 %v837, %v833
    %v1054 = vpack.c.b16 %v838, %v834
    %v1055 = vpack.c.b16 %v839, %v835
    %v1056 = vpack.c.b16 %v844, %v840
    %v1057 = vpack.c.b16 %v845, %v841
    %v1058 = vpack.c.b16 %v846, %v842
    %v1059 = vpack.c.b16 %v847, %v843
    %v1060 = vpack.c.b16 %v852, %v848
    %v1061 = vpack.c.b16 %v853, %v849
    %v1062 = vpack.c.b16 %v854, %v850
    %v1063 = vpack.c.b16 %v855, %v851
    %v1064 = vpack.c.b16 %v860, %v856
    %v1065 = vpack.c.b16 %v861, %v857
    %v1066 = vpack.c.b16 %v862, %v858
    %v1067 = vpack.c.b16 %v863, %v859
    %v1068 = vpack.c.b16 %v868, %v864
    %v1069 = vpack.c.b16 %v869, %v865
    %v1070 = vpack.c.b16 %v870, %v866
    %v1071 = vpack.c.b16 %v871, %v867
    %v1072 = vpack.c.b16 %v876, %v872
    %v1073 = vpack.c.b16 %v877, %v873
    %v1074 = vpack.c.b16 %v878, %v874
    %v1075 = vpack.c.b16 %v879, %v875
    %v1076 = vpack.c.b16 %v884, %v880
    %v1077 = vpack.c.b16 %v885, %v881
    %v1078 = vpack.c.b16 %v886, %v882
    %v1079 = vpack.c.b16 %v887, %v883
    %v1080 = vpack.c.b16 %v892, %v888
    %v1081 = vpack.c.b16 %v893, %v889
    %v1082 = vpack.c.b16 %v894, %v890
    %v1083 = vpack.c.b16 %v895, %v891
    %v1084 = vpack.c.b16 %v900, %v896
    %v1085 = vpack.c.b16 %v901, %v897
    %v1086 = vpack.c.b16 %v902, %v898
    %v1087 = vpack.c.b16 %v903, %v899
    %v1088 = vpack.c.b16 %v908, %v904
    %v1089 = vpack.c.b16 %v909, %v905
    %v1090 = vpack.c.b16 %v910, %v906
    %v1091 = vpack.c.b16 %v911, %v907
    %v1092 = vpack.c.b16 %v916, %v912
    %v1093 = vpack.c.b16 %v917, %v913
    %v1094 = vpack.c.b16 %v918, %v914
    %v1095 = vpack.c.b16 %v919, %v915
    %v1096 = vpack.c.b16 %v924, %v920
    %v1097 = vpack.c.b16 %v925, %v921
    %v1098 = vpack.c.b16 %v926, %v922
    %v1099 = vpack.c.b16 %v927, %v923
    %v1100 = vpack.c.b16 %v932, %v928
    %v1101 = vpack.c.b16 %v933, %v929
    %v1102 = vpack.c.b16 %v934, %v930
    %v1103 = vpack.c.b16 %v935, %v931
    %v1104 = vpack.c.b16 %v940, %v936
    %v1105 = vpack.c.b16 %v941, %v937
    %v1106 = vpack.c.b16 %v942, %v938
    %v1107 = vpack.c.b16 %v943, %v939
    %v1108 = vpack.c.b16 %v948, %v944
    %v1109 = vpack.c.b16 %v949, %v945
    %v1110 = vpack.c.b16 %v950, %v946
    %v1111 = vpack.c.b16 %v951, %v947
    %v1112 = vpack.c.b16 %v956, %v952
    %v1113 = vpack.c.b16 %v957, %v953
    %v1114 = vpack.c.b16 %v958, %v954
    %v1115 = vpack.c.b16 %v959, %v955
    %v1116 = vpack.c.b16 %v964, %v960
    %v1117 = vpack.c.b16 %v965, %v961
    %v1118 = vpack.c.b16 %v966, %v962
    %v1119 = vpack.c.b16 %v967, %v963
    %v1120 = vpack.c.b16 %v972, %v968
    %v1121 = vpack.c.b16 %v973, %v969
    %v1122 = vpack.c.b16 %v974, %v970
    %v1123 = vpack.c.b16 %v975, %v971
    %v1124 = vpack.c.b16 %v980, %v976
    %v1125 = vpack.c.b16 %v981, %v977
    %v1126 = vpack.c.b16 %v982, %v978
    %v1127 = vpack.c.b16 %v983, %v979
    %v1128 = vpack.c.b16 %v988, %v984
    %v1129 = vpack.c.b16 %v989, %v985
    %v1130 = vpack.c.b16 %v990, %v986
    %v1131 = vpack.c.b16 %v991, %v987
    %v1132 = vpack.c.b16 %v996, %v992
    %v1133 = vpack.c.b16 %v997, %v993
    %v1134 = vpack.c.b16 %v998, %v994
    %v1135 = vpack.c.b16 %v999, %v995
    %v1136 = vpack.c.b16 %v1004, %v1000
    %v1137 = vpack.c.b16 %v1005, %v1001
    %v1138 = vpack.c.b16 %v1006, %v1002
    %v1139 = vpack.c.b16 %v1007, %v1003
    %v1140 = vpack.c.b16 %v1012, %v1008
    %v1141 = vpack.c.b16 %v1013, %v1009
    %v1142 = vpack.c.b16 %v1014, %v1010
    %v1143 = vpack.c.b16 %v1015, %v1011
    %1272 = vmatprep.subr.bf16.mxu0 %v1017
    %1273 = vmatpush1.bf16.msra.mxu0 %v1016
    %1274 = vmatprep.subr.bf16.mxu0 %v1021
    %1275 = vmatpush1.bf16.msra.mxu0 %v1020
    %1276 = vmatprep.subr.bf16.mxu0 %v1025
    %1277 = vmatpush1.bf16.msra.mxu0 %v1024
    %1278 = vmatprep.subr.bf16.mxu0 %v1029
    %1279 = vmatpush1.bf16.msra.mxu0 %v1028
    %1280 = vmatprep.subr.bf16.mxu0 %v1033
    %1281 = vmatpush1.bf16.msra.mxu0 %v1032
    %1282 = vmatprep.subr.bf16.mxu0 %v1037
    %1283 = vmatpush1.bf16.msra.mxu0 %v1036
    %1284 = vmatprep.subr.bf16.mxu0 %v1041
    %1285 = vmatpush1.bf16.msra.mxu0 %v1040
    %1286 = vmatprep.subr.bf16.mxu0 %v1045
    %1287 = vmatpush1.bf16.msra.mxu0 %v1044
    %1288 = vmatprep.subr.bf16.mxu0 %v1049
    %1289 = vmatpush1.bf16.msra.mxu0 %v1048
    %1290 = vmatprep.subr.bf16.mxu0 %v1053
    %1291 = vmatpush1.bf16.msra.mxu0 %v1052
    %1292 = vmatprep.subr.bf16.mxu0 %v1057
    %1293 = vmatpush1.bf16.msra.mxu0 %v1056
    %1294 = vmatprep.subr.bf16.mxu0 %v1061
    %1295 = vmatpush1.bf16.msra.mxu0 %v1060
    %1296 = vmatprep.subr.bf16.mxu0 %v1065
    %1297 = vmatpush1.bf16.msra.mxu0 %v1064
    %1298 = vmatprep.subr.bf16.mxu0 %v1069
    %1299 = vmatpush1.bf16.msra.mxu0 %v1068
    %1300 = vmatprep.subr.bf16.mxu0 %v1073
    %1301 = vmatpush1.bf16.msra.mxu0 %v1072
    %1302 = vmatprep.subr.bf16.mxu0 %v1077
    %1303 = vmatpush1.bf16.msra.mxu0 %v1076
    %1304 = vmatprep.mubr.bf16.mxu0 %v479
    %1305 = vmatmul.mubr.bf16.gmra.mrb[0].mxu0 %v478
    %v1306 = vpop.f32.mrb[0].mxu0
    %v1307 = vadd.f32 %v615, %v1306
    %v1308 = vpop.f32.mrb[0].mxu0
    %v1309 = vadd.f32 %v619, %v1308
    %v1310 = vpop.f32.mrb[0].mxu0
    %v1311 = vpop.f32.mrb[0].mxu0
    %1312 = vdwg.mxu0
    %1313 = vmatprep.subr.bf16.mxu0 %v1081
    %1314 = vmatpush1.bf16.msra.mxu0 %v1080
    %1315 = vmatprep.subr.bf16.mxu0 %v1085
    %1316 = vmatpush1.bf16.msra.mxu0 %v1084
    %1317 = vmatprep.subr.bf16.mxu0 %v1089
    %1318 = vmatpush1.bf16.msra.mxu0 %v1088
    %1319 = vmatprep.subr.bf16.mxu0 %v1093
    %1320 = vmatpush1.bf16.msra.mxu0 %v1092
    %1321 = vmatprep.subr.bf16.mxu0 %v1097
    %1322 = vmatpush1.bf16.msra.mxu0 %v1096
    %1323 = vmatprep.subr.bf16.mxu0 %v1101
    %1324 = vmatpush1.bf16.msra.mxu0 %v1100
    %1325 = vmatprep.subr.bf16.mxu0 %v1105
    %1326 = vmatpush1.bf16.msra.mxu0 %v1104
    %1327 = vmatprep.subr.bf16.mxu0 %v1109
    %1328 = vmatpush1.bf16.msra.mxu0 %v1108
    %1329 = vmatprep.subr.bf16.mxu0 %v1113
    %1330 = vmatpush1.bf16.msra.mxu0 %v1112
    %1331 = vmatprep.subr.bf16.mxu0 %v1117
    %1332 = vmatpush1.bf16.msra.mxu0 %v1116
    %1333 = vmatprep.subr.bf16.mxu0 %v1121
    %1334 = vmatpush1.bf16.msra.mxu0 %v1120
    %1335 = vmatprep.subr.bf16.mxu0 %v1125
    %1336 = vmatpush1.bf16.msra.mxu0 %v1124
    %1337 = vmatprep.subr.bf16.mxu0 %v1129
    %1338 = vmatpush1.bf16.msra.mxu0 %v1128
    %1339 = vmatprep.subr.bf16.mxu0 %v1133
    %1340 = vmatpush1.bf16.msra.mxu0 %v1132
    %1341 = vmatprep.subr.bf16.mxu0 %v1137
    %1342 = vmatpush1.bf16.msra.mxu0 %v1136
    %1343 = vmatprep.subr.bf16.mxu0 %v1141
    %1344 = vmatpush1.bf16.msra.mxu0 %v1140
    %1345 = vmatprep.mubr.bf16.mxu0 %v481
    %1346 = vmatmul.mubr.bf16.gmra.mrb[0].mxu0 %v480
    %v1347 = vpop.f32.mrb[0].mxu0
    %v1348 = vadd.f32 %v1307, %v1347
    %v1349 = vpop.f32.mrb[0].mxu0
    %v1350 = vadd.f32 %v1309, %v1349
    %v1351 = vpop.f32.mrb[0].mxu0
    %v1352 = vpop.f32.mrb[0].mxu0
    %1353 = vdwg.mxu0
    %1354 = vmatprep.subr.bf16.mxu0 %v1019
    %1355 = vmatpush1.bf16.msra.mxu0 %v1018
    %1356 = vmatprep.subr.bf16.mxu0 %v1023
    %1357 = vmatpush1.bf16.msra.mxu0 %v1022
    %1358 = vmatprep.subr.bf16.mxu0 %v1027
    %1359 = vmatpush1.bf16.msra.mxu0 %v1026
    %1360 = vmatprep.subr.bf16.mxu0 %v1031
    %1361 = vmatpush1.bf16.msra.mxu0 %v1030
    %1362 = vmatprep.subr.bf16.mxu0 %v1035
    %1363 = vmatpush1.bf16.msra.mxu0 %v1034
    %1364 = vmatprep.subr.bf16.mxu0 %v1039
    %1365 = vmatpush1.bf16.msra.mxu0 %v1038
    %1366 = vmatprep.subr.bf16.mxu0 %v1043
    %1367 = vmatpush1.bf16.msra.mxu0 %v1042
    %1368 = vmatprep.subr.bf16.mxu0 %v1047
    %1369 = vmatpush1.bf16.msra.mxu0 %v1046
    %1370 = vmatprep.subr.bf16.mxu0 %v1051
    %1371 = vmatpush1.bf16.msra.mxu0 %v1050
    %1372 = vmatprep.subr.bf16.mxu0 %v1055
    %1373 = vmatpush1.bf16.msra.mxu0 %v1054
    %1374 = vmatprep.subr.bf16.mxu0 %v1059
    %1375 = vmatpush1.bf16.msra.mxu0 %v1058
    %1376 = vmatprep.subr.bf16.mxu0 %v1063
    %1377 = vmatpush1.bf16.msra.mxu0 %v1062
    %1378 = vmatprep.subr.bf16.mxu0 %v1067
    %1379 = vmatpush1.bf16.msra.mxu0 %v1066
    %1380 = vmatprep.subr.bf16.mxu0 %v1071
    %1381 = vmatpush1.bf16.msra.mxu0 %v1070
    %1382 = vmatprep.subr.bf16.mxu0 %v1075
    %1383 = vmatpush1.bf16.msra.mxu0 %v1074
    %1384 = vmatprep.subr.bf16.mxu0 %v1079
    %1385 = vmatpush1.bf16.msra.mxu0 %v1078
    %1386 = vmatprep.mubr.bf16.mxu0 %v479
    %1387 = vmatmul.mubr.bf16.gmra.mrb[0].mxu0 %v478
    %v1388 = vpop.f32.mrb[0].mxu0
    %v1389 = vadd.f32 %v623, %v1388
    %v1390 = vpop.f32.mrb[0].mxu0
    %v1391 = vadd.f32 %v627, %v1390
    %v1392 = vpop.f32.mrb[0].mxu0
    %v1393 = vpop.f32.mrb[0].mxu0
    %1394 = vdwg.mxu0
    %1395 = vmatprep.subr.bf16.mxu0 %v1083
    %1396 = vmatpush1.bf16.msra.mxu0 %v1082
    %1397 = vmatprep.subr.bf16.mxu0 %v1087
    %1398 = vmatpush1.bf16.msra.mxu0 %v1086
    %1399 = vmatprep.subr.bf16.mxu0 %v1091
    %1400 = vmatpush1.bf16.msra.mxu0 %v1090
    %1401 = vmatprep.subr.bf16.mxu0 %v1095
    %1402 = vmatpush1.bf16.msra.mxu0 %v1094
    %1403 = vmatprep.subr.bf16.mxu0 %v1099
    %1404 = vmatpush1.bf16.msra.mxu0 %v1098
    %1405 = vmatprep.subr.bf16.mxu0 %v1103
    %1406 = vmatpush1.bf16.msra.mxu0 %v1102
    %1407 = vmatprep.subr.bf16.mxu0 %v1107
    %1408 = vmatpush1.bf16.msra.mxu0 %v1106
    %1409 = vmatprep.subr.bf16.mxu0 %v1111
    %1410 = vmatpush1.bf16.msra.mxu0 %v1110
    %1411 = vmatprep.subr.bf16.mxu0 %v1115
    %1412 = vmatpush1.bf16.msra.mxu0 %v1114
    %1413 = vmatprep.subr.bf16.mxu0 %v1119
    %1414 = vmatpush1.bf16.msra.mxu0 %v1118
    %1415 = vmatprep.subr.bf16.mxu0 %v1123
    %1416 = vmatpush1.bf16.msra.mxu0 %v1122
    %1417 = vmatprep.subr.bf16.mxu0 %v1127
    %1418 = vmatpush1.bf16.msra.mxu0 %v1126
    %1419 = vmatprep.subr.bf16.mxu0 %v1131
    %1420 = vmatpush1.bf16.msra.mxu0 %v1130
    %1421 = vmatprep.subr.bf16.mxu0 %v1135
    %1422 = vmatpush1.bf16.msra.mxu0 %v1134
    %1423 = vmatprep.subr.bf16.mxu0 %v1139
    %1424 = vmatpush1.bf16.msra.mxu0 %v1138
    %1425 = vmatprep.subr.bf16.mxu0 %v1143
    %1426 = vmatpush1.bf16.msra.mxu0 %v1142
    %1427 = vmatprep.mubr.bf16.mxu0 %v481
    %1428 = vmatmul.mubr.bf16.gmra.mrb[0].mxu0 %v480
    %v1429 = vpop.f32.mrb[0].mxu0
    %v1430 = vadd.f32 %v1389, %v1429
    %v1431 = vpop.f32.mrb[0].mxu0
    %v1432 = vadd.f32 %v1391, %v1431
    %v1433 = vpop.f32.mrb[0].mxu0
    %v1434 = vpop.f32.mrb[0].mxu0
    %1435 = vdwg.mxu0
    %1436 = vst [vmem:[#allocation8] sm:$0xff] %v1348
    %1437 = vst [vmem:[#allocation8 + $0x8] sm:$0xff] %v1350
    %1438 = vst [vmem:[#allocation8 + $0x10] sm:$0xff] %v1430
    %1439 = vst [vmem:[#allocation8 + $0x18] sm:$0xff] %v1432
    // Predicated region
    $region38: #{time_embedding_forward.1} parent=1 // pred_check
      _
    $region39: #{time_embedding_forward.1} parent=1 // pred_check_branch
      %1441 = sbr.rel (0) target = $region41
    $region40: #{time_embedding_forward.1} parent=1 // pred_region
      %s1443 = ssub.s32 512, 512
      %1444 = vsyncadd [#allocation4], %s1443
      %s1446 = sshll.u32 [#allocation8], 4
      %s1447 = int_to_ptr.vmem [resolvable:$true] %s1446
      %1449 = dma.vmem_to_hbm [thread:$0]  %s1447, 512, %s6, [#allocation4]
    $region41: #{time_embedding_forward.1} parent=1 // pred_fallthru
      _
    // Predicated region
    $region42: #{time_embedding_forward.1} parent=1 // pred_check
      _
    $region43: #{time_embedding_forward.1} parent=1 // pred_check_branch
      %1451 = sbr.rel (0) target = $region45
    $region44: #{time_embedding_forward.1} parent=1 // pred_region
      %1452 = dma.done [#allocation4], 512
    $region45: #{time_embedding_forward.1} parent=1 // pred_fallthru
      _
    %1453 = vsyncpa [#allocation3], 1
    %1454 = vsyncpa [#allocation6], 1
    %1455 = vsyncpa [#allocation4], 1

</llo_original>
